<compile_context>
chip_gen: v7x
topology: tpu7x:2x2x1
jax: 0.10.0
libtpu: 0.0.40
codegen_flags: <defaults>
</compile_context>

<pallas_src>
import functools

import jax
import jax.numpy as jnp
from jax import lax
from jax.experimental import pallas as pl
from jax.experimental.pallas import tpu as pltpu

EPS = 1e-5  # nn.BatchNorm2d default eps


def _fused_conv_bn_relu_kernel(p_ref, w_ref, g_ref, b_ref, o_ref):
    """im2col conv (one MXU dot per batch element) + train-mode BN + ReLU, all in VMEM.

    p_ref: (N, K, M)    bf16  im2col patches, K = Cin*KH*KW, M = Hout*Wout (lane-dense)
    w_ref: (Cout, K)    bf16  conv weights, reshaped OIHW -> (Cout, Cin*KH*KW)
    g_ref: (Cout, 1)    f32   BatchNorm gamma
    b_ref: (Cout, 1)    f32   BatchNorm beta
    o_ref: (N, Cout, M) f32   output (NCHW-ready: free reshape to (N, Cout, Hout, Wout))
    """
    N, _, M = p_ref.shape
    Cout = o_ref.shape[1]
    count = jnp.float32(N * M)
    w = w_ref[...]

    # Pass A: convolution (single im2col contraction per batch element, f32 MXU accum)
    # plus per-channel sums for the batch mean.  Output ref doubles as the staging buffer.
    ch_sum = jnp.zeros((Cout, 1), jnp.float32)
    for n in range(N):
        y = jnp.dot(w, p_ref[n], preferred_element_type=jnp.float32)   # (Cout, M) f32
        o_ref[n] = y
        ch_sum = ch_sum + jnp.sum(y, axis=1, keepdims=True)
    mean = ch_sum / count                                               # (Cout, 1)

    # Pass B: centered sum of squares (avoids E[x^2] - mean^2 cancellation).
    ch_sq = jnp.zeros((Cout, 1), jnp.float32)
    for n in range(N):
        c = o_ref[n] - mean
        ch_sq = ch_sq + jnp.sum(c * c, axis=1, keepdims=True)
    var = ch_sq / count                                                 # biased, train-mode
    inv = lax.rsqrt(var + EPS)
    scale = g_ref[...] * inv                                            # (Cout, 1)
    shift = b_ref[...] - mean * scale                                   # (Cout, 1)

    # Pass C: folded BN affine + ReLU, fully lane-dense stores.
    for n in range(N):
        o_ref[n] = jnp.maximum(o_ref[n] * scale + shift, 0.0)


@functools.partial(jax.jit, static_argnames=("padding", "dilation", "drop_val"))
def conv2d_basic_block(x_nchw, w_oihw, gamma, beta, *, padding=0, dilation=1,
                       drop_val=0.0):
    """Forward pass of Conv2d_BasicBlock. Inputs/outputs are NCHW, like PyTorch."""
    assert drop_val == 0.0
    # TODO(synk): dropout path (drop_val != 0, training-mode inverted dropout with
    # PyTorch RNG) is not reproduced; drop_val == 0 skips it, matching the module.

    N, Cin, H, W = x_nchw.shape
    Cout, _, KH, KW = w_oihw.shape
    Hout = H + 2 * padding - dilation * (KH - 1)
    Wout = W + 2 * padding - dilation * (KW - 1)
    M = Hout * Wout
    K = Cin * KH * KW

    # --- wrapper-side im2col (one XLA pass): (N, Cin*KH*KW, Hout, Wout) ---
    # Feature ordering is channel-major: k = c*KH*KW + kh*KW + kw, which matches
    # w_oihw.reshape(Cout, Cin*KH*KW) exactly.
    patches = lax.conv_general_dilated_patches(
        x_nchw.astype(jnp.float32), (KH, KW), (1, 1),
        [(padding, padding), (padding, padding)],
        rhs_dilation=(dilation, dilation))
    patches = patches.reshape(N, K, M).astype(jnp.bfloat16)   # bf16 halves streamed bytes
    w2d = w_oihw.reshape(Cout, K).astype(jnp.bfloat16)
    g = gamma.astype(jnp.float32).reshape(Cout, 1)
    b = beta.astype(jnp.float32).reshape(Cout, 1)

    # Single-fused-step VMEM gate (keep well under v7x's 64 MiB physical / 48 MiB safe cap).
    vmem_needed = (patches.size * 2 + w2d.size * 2          # bf16 inputs
                   + N * Cout * M * 4                        # f32 output staging
                   + 4 * Cout * 4)                           # gamma/beta + stats
    assert vmem_needed < 40 * 1024 * 1024, vmem_needed
    # TODO(synk): tiled two-pass fallback when the single-step gate above fails.

    flops = 2 * N * M * K * Cout + 8 * N * Cout * M
    bytes_accessed = (patches.size * 2 + w2d.size * 2 + N * Cout * M * 4 + 4 * Cout * 4)

    vmem = pl.BlockSpec(memory_space=pltpu.MemorySpace.VMEM)
    out = pl.pallas_call(
        _fused_conv_bn_relu_kernel,
        out_shape=jax.ShapeDtypeStruct((N, Cout, M), jnp.float32),
        in_specs=[vmem, vmem, vmem, vmem],
        out_specs=vmem,
        compiler_params=pltpu.CompilerParams(vmem_limit_bytes=32 * 1024 * 1024),
        cost_estimate=pl.CostEstimate(flops=flops, transcendentals=Cout,
                                      bytes_accessed=bytes_accessed),
    )(patches, w2d, g, b)

    # (N, Cout, Hout*Wout) is already channel-major -> free reshape to NCHW.
    return out.reshape(N, Cout, Hout, Wout)


def _reference(x_nchw, w_oihw, gamma, beta, *, padding, dilation,
               matmul_dtype=jnp.float32):
    """Pure-JAX reference (conv + train-mode BN + ReLU), NCHW."""
    y = lax.conv_general_dilated(
        x_nchw.astype(matmul_dtype), w_oihw.astype(matmul_dtype),
        window_strides=(1, 1), padding=[(padding, padding), (padding, padding)],
        rhs_dilation=(dilation, dilation),
        dimension_numbers=("NCHW", "OIHW", "NCHW"),
        preferred_element_type=jnp.float32)
    mean = jnp.mean(y, axis=(0, 2, 3), keepdims=True)
    var = jnp.mean((y - mean) ** 2, axis=(0, 2, 3), keepdims=True)
    y = (y - mean) / jnp.sqrt(var + EPS)
    y = y * gamma.reshape(1, -1, 1, 1) + beta.reshape(1, -1, 1, 1)
    return jnp.maximum(y, 0.0)


if __name__ == "__main__":
    # Module config: Conv2d_BasicBlock(inC=8, outC=16, ksize=3, padding=1, dilation=1)
    inC, outC, ksize, padding, dilation = 8, 16, 3, 1, 1
    N, H, W = 2, 16, 16

    key = jax.random.PRNGKey(0)
    kx, kw = jax.random.split(key)
    x = jax.random.normal(kx, (N, inC, H, W), dtype=jnp.float32)                   # NCHW
    w = jax.random.normal(kw, (outC, inC, ksize, ksize), dtype=jnp.float32) * 0.1  # OIHW
    gamma = jnp.ones((outC,), jnp.float32)   # BatchNorm2d default weight init
    beta = jnp.zeros((outC,), jnp.float32)   # BatchNorm2d default bias init

    out = conv2d_basic_block(x, w, gamma, beta, padding=padding,
                             dilation=dilation, drop_val=0.0)
    out = jax.block_until_ready(out)
    assert out.shape == (N, outC, H, W), out.shape

    # Tight check vs a reference using the same bf16 matmul operands (f32 accumulation).
    ref_bf16 = _reference(x, w, gamma, beta, padding=padding, dilation=dilation,
                          matmul_dtype=jnp.bfloat16)
    # Loose check vs full-f32 module semantics (bf16 MXU operands -> ~1e-2 tolerance).
    ref_f32 = _reference(x, w, gamma, beta, padding=padding, dilation=dilation,
                         matmul_dtype=jnp.float32)
    err_tight = float(jnp.max(jnp.abs(out - ref_bf16)))
    err_loose = float(jnp.max(jnp.abs(out - ref_f32)))
    assert err_tight < 2e-3, err_tight
    assert err_loose < 5e-2, err_loose

    print("KERNEL_OK")
</pallas_src>

<mosaic_0001>
module attributes {stable_mosaic.version = 11 : i64} {
  func.func @_fused_conv_bn_relu_kernel(%arg0: memref<2x72x256xbf16, #tpu.memory_space<vmem>>, %arg1: memref<16x72xbf16, #tpu.memory_space<vmem>>, %arg2: memref<16x1xf32, #tpu.memory_space<vmem>>, %arg3: memref<16x1xf32, #tpu.memory_space<vmem>>, %arg4: memref<2x16x256xf32, #tpu.memory_space<vmem>>) attributes {dimension_semantics = [], scalar_prefetch = 0 : i64, scratch_operands = 0 : i64, tpu.core_type = #tpu.core_type<tc>} {
    %c0 = arith.constant 0 : index
    %c0_0 = arith.constant 0 : index
    %0 = vector.load %arg1[%c0, %c0_0] : memref<16x72xbf16, #tpu.memory_space<vmem>>, vector<16x72xbf16>
    %cst = arith.constant 0.000000e+00 : f32
    %1 = vector.broadcast %cst : f32 to vector<16x1xf32>
    %c0_1 = arith.constant 0 : index
    %c0_2 = arith.constant 0 : index
    %c0_3 = arith.constant 0 : index
    %2 = vector.load %arg0[%c0_1, %c0_2, %c0_3] : memref<2x72x256xbf16, #tpu.memory_space<vmem>>, vector<1x72x256xbf16>
    %3 = vector.shape_cast %2 : vector<1x72x256xbf16> to vector<72x256xbf16>
    %cst_4 = arith.constant dense<0.000000e+00> : vector<16x256xf32>
    %4 = tpu.matmul %0, %3, %cst_4 {dimension_numbers = #tpu.dot_dimension_numbers<[1], [0], [0], [1], [0, 0, 1, 1], [], []>} : vector<16x72xbf16>, vector<72x256xbf16>, vector<16x256xf32> -> vector<16x256xf32>
    %c0_5 = arith.constant 0 : index
    %c0_6 = arith.constant 0 : index
    %c0_7 = arith.constant 0 : index
    %5 = vector.load %arg4[%c0_5, %c0_6, %c0_7] : memref<2x16x256xf32, #tpu.memory_space<vmem>>, vector<1x16x256xf32>
    %6 = vector.shape_cast %5 : vector<1x16x256xf32> to vector<16x256xf32>
    %7 = vector.shape_cast %4 : vector<16x256xf32> to vector<1x16x256xf32>
    tpu.vector_store %arg4[%c0_5, %c0_6, %c0_7], %7 {strides = array<i32>} : memref<2x16x256xf32, #tpu.memory_space<vmem>>, vector<1x16x256xf32>,
    %cst_8 = arith.constant dense<0.000000e+00> : vector<16xf32>
    %8 = vector.multi_reduction <add>, %4, %cst_8 [1] : vector<16x256xf32> to vector<16xf32>
    %9 = vector.shape_cast %8 : vector<16xf32> to vector<16x1xf32>
    %10 = arith.addf %1, %9 : vector<16x1xf32>
    %c1 = arith.constant 1 : index
    %c0_9 = arith.constant 0 : index
    %c0_10 = arith.constant 0 : index
    %11 = vector.load %arg0[%c1, %c0_9, %c0_10] : memref<2x72x256xbf16, #tpu.memory_space<vmem>>, vector<1x72x256xbf16>
    %12 = vector.shape_cast %11 : vector<1x72x256xbf16> to vector<72x256xbf16>
    %cst_11 = arith.constant dense<0.000000e+00> : vector<16x256xf32>
    %13 = tpu.matmul %0, %12, %cst_11 {dimension_numbers = #tpu.dot_dimension_numbers<[1], [0], [0], [1], [0, 0, 1, 1], [], []>} : vector<16x72xbf16>, vector<72x256xbf16>, vector<16x256xf32> -> vector<16x256xf32>
    %c1_12 = arith.constant 1 : index
    %c0_13 = arith.constant 0 : index
    %c0_14 = arith.constant 0 : index
    %14 = vector.load %arg4[%c1_12, %c0_13, %c0_14] : memref<2x16x256xf32, #tpu.memory_space<vmem>>, vector<1x16x256xf32>
    %15 = vector.shape_cast %14 : vector<1x16x256xf32> to vector<16x256xf32>
    %16 = vector.shape_cast %13 : vector<16x256xf32> to vector<1x16x256xf32>
    tpu.vector_store %arg4[%c1_12, %c0_13, %c0_14], %16 {strides = array<i32>} : memref<2x16x256xf32, #tpu.memory_space<vmem>>, vector<1x16x256xf32>,
    %cst_15 = arith.constant dense<0.000000e+00> : vector<16xf32>
    %17 = vector.multi_reduction <add>, %13, %cst_15 [1] : vector<16x256xf32> to vector<16xf32>
    %18 = vector.shape_cast %17 : vector<16xf32> to vector<16x1xf32>
    %19 = arith.addf %10, %18 : vector<16x1xf32>
    %cst_16 = arith.constant 5.120000e+02 : f32
    %20 = vector.broadcast %cst_16 : f32 to vector<16x1xf32>
    %21 = arith.divf %19, %20 : vector<16x1xf32>
    %cst_17 = arith.constant 0.000000e+00 : f32
    %22 = vector.broadcast %cst_17 : f32 to vector<16x1xf32>
    %c0_18 = arith.constant 0 : index
    %c0_19 = arith.constant 0 : index
    %c0_20 = arith.constant 0 : index
    %23 = vector.load %arg4[%c0_18, %c0_19, %c0_20] : memref<2x16x256xf32, #tpu.memory_space<vmem>>, vector<1x16x256xf32>
    %24 = vector.shape_cast %23 : vector<1x16x256xf32> to vector<16x256xf32>
    %25 = vector.broadcast %21 : vector<16x1xf32> to vector<16x256xf32>
    %26 = arith.subf %24, %25 : vector<16x256xf32>
    %27 = arith.mulf %26, %26 : vector<16x256xf32>
    %cst_21 = arith.constant dense<0.000000e+00> : vector<16xf32>
    %28 = vector.multi_reduction <add>, %27, %cst_21 [1] : vector<16x256xf32> to vector<16xf32>
    %29 = vector.shape_cast %28 : vector<16xf32> to vector<16x1xf32>
    %30 = arith.addf %22, %29 : vector<16x1xf32>
    %c1_22 = arith.constant 1 : index
    %c0_23 = arith.constant 0 : index
    %c0_24 = arith.constant 0 : index
    %31 = vector.load %arg4[%c1_22, %c0_23, %c0_24] : memref<2x16x256xf32, #tpu.memory_space<vmem>>, vector<1x16x256xf32>
    %32 = vector.shape_cast %31 : vector<1x16x256xf32> to vector<16x256xf32>
    %33 = vector.broadcast %21 : vector<16x1xf32> to vector<16x256xf32>
    %34 = arith.subf %32, %33 : vector<16x256xf32>
    %35 = arith.mulf %34, %34 : vector<16x256xf32>
    %cst_25 = arith.constant dense<0.000000e+00> : vector<16xf32>
    %36 = vector.multi_reduction <add>, %35, %cst_25 [1] : vector<16x256xf32> to vector<16xf32>
    %37 = vector.shape_cast %36 : vector<16xf32> to vector<16x1xf32>
    %38 = arith.addf %30, %37 : vector<16x1xf32>
    %cst_26 = arith.constant 5.120000e+02 : f32
    %39 = vector.broadcast %cst_26 : f32 to vector<16x1xf32>
    %40 = arith.divf %38, %39 : vector<16x1xf32>
    %cst_27 = arith.constant 9.99999974E-6 : f32
    %41 = vector.broadcast %cst_27 : f32 to vector<16x1xf32>
    %42 = arith.addf %40, %41 : vector<16x1xf32>
    %43 = math.rsqrt %42 : vector<16x1xf32>
    %c0_28 = arith.constant 0 : index
    %c0_29 = arith.constant 0 : index
    %44 = vector.load %arg2[%c0_28, %c0_29] : memref<16x1xf32, #tpu.memory_space<vmem>>, vector<16x1xf32>
    %45 = arith.mulf %44, %43 : vector<16x1xf32>
    %c0_30 = arith.constant 0 : index
    %c0_31 = arith.constant 0 : index
    %46 = vector.load %arg3[%c0_30, %c0_31] : memref<16x1xf32, #tpu.memory_space<vmem>>, vector<16x1xf32>
    %47 = arith.mulf %21, %45 : vector<16x1xf32>
    %48 = arith.subf %46, %47 : vector<16x1xf32>
    %c0_32 = arith.constant 0 : index
    %c0_33 = arith.constant 0 : index
    %c0_34 = arith.constant 0 : index
    %49 = vector.load %arg4[%c0_32, %c0_33, %c0_34] : memref<2x16x256xf32, #tpu.memory_space<vmem>>, vector<1x16x256xf32>
    %50 = vector.shape_cast %49 : vector<1x16x256xf32> to vector<16x256xf32>
    %51 = vector.broadcast %45 : vector<16x1xf32> to vector<16x256xf32>
    %52 = arith.mulf %50, %51 : vector<16x256xf32>
    %53 = vector.broadcast %48 : vector<16x1xf32> to vector<16x256xf32>
    %54 = arith.addf %52, %53 : vector<16x256xf32>
    %cst_35 = arith.constant 0.000000e+00 : f32
    %55 = vector.broadcast %cst_35 : f32 to vector<16x256xf32>
    %56 = arith.maximumf %54, %55 : vector<16x256xf32>
    %c0_36 = arith.constant 0 : index
    %c0_37 = arith.constant 0 : index
    %c0_38 = arith.constant 0 : index
    %57 = vector.load %arg4[%c0_36, %c0_37, %c0_38] : memref<2x16x256xf32, #tpu.memory_space<vmem>>, vector<1x16x256xf32>
    %58 = vector.shape_cast %57 : vector<1x16x256xf32> to vector<16x256xf32>
    %59 = vector.shape_cast %56 : vector<16x256xf32> to vector<1x16x256xf32>
    tpu.vector_store %arg4[%c0_36, %c0_37, %c0_38], %59 {strides = array<i32>} : memref<2x16x256xf32, #tpu.memory_space<vmem>>, vector<1x16x256xf32>,
    %c1_39 = arith.constant 1 : index
    %c0_40 = arith.constant 0 : index
    %c0_41 = arith.constant 0 : index
    %60 = vector.load %arg4[%c1_39, %c0_40, %c0_41] : memref<2x16x256xf32, #tpu.memory_space<vmem>>, vector<1x16x256xf32>
    %61 = vector.shape_cast %60 : vector<1x16x256xf32> to vector<16x256xf32>
    %62 = vector.broadcast %45 : vector<16x1xf32> to vector<16x256xf32>
    %63 = arith.mulf %61, %62 : vector<16x256xf32>
    %64 = vector.broadcast %48 : vector<16x1xf32> to vector<16x256xf32>
    %65 = arith.addf %63, %64 : vector<16x256xf32>
    %cst_42 = arith.constant 0.000000e+00 : f32
    %66 = vector.broadcast %cst_42 : f32 to vector<16x256xf32>
    %67 = arith.maximumf %65, %66 : vector<16x256xf32>
    %c1_43 = arith.constant 1 : index
    %c0_44 = arith.constant 0 : index
    %c0_45 = arith.constant 0 : index
    %68 = vector.load %arg4[%c1_43, %c0_44, %c0_45] : memref<2x16x256xf32, #tpu.memory_space<vmem>>, vector<1x16x256xf32>
    %69 = vector.shape_cast %68 : vector<1x16x256xf32> to vector<16x256xf32>
    %70 = vector.shape_cast %67 : vector<16x256xf32> to vector<1x16x256xf32>
    tpu.vector_store %arg4[%c1_43, %c0_44, %c0_45], %70 {strides = array<i32>} : memref<2x16x256xf32, #tpu.memory_space<vmem>>, vector<1x16x256xf32>,
    return
  }
}

</mosaic_0001>

<llo_original>
// kernel: conv2d_basic_block.1
$region0: #{conv2d_basic_block.1}
  #allocation0 [shape = 'u32[]', space=smem, size = 0x4, offset = 0x4, fixed_abs, tag = 'smem constant byte address 0x4 - core index']
  #allocation1 [shape = 'u32[144,128]{1,0:T(1,128)}', space=vmem, size = 0x12000, scoped, tag = 'internal scratch']
  %s0 = inlined_call_operand.vmem [shape: bf16[2,72,256], index: 0, kind: input, shape index: {}]
  %s1 = inlined_call_operand.vmem [shape: bf16[16,72], index: 1, kind: input, shape index: {}]
  %s2 = inlined_call_operand.vmem [shape: f32[16,1], index: 2, kind: input, shape index: {}]
  %s3 = inlined_call_operand.vmem [shape: f32[16,1], index: 3, kind: input, shape index: {}]
  %s4 = inlined_call_operand.vmem [shape: f32[2,16,256], index: 4, kind: output, shape index: {}]
  %s5 = sld [smem:[#allocation0]]
  $region26: #{conv2d_basic_block.1} parent=0
    _
  %s7 = ssub.s32 1, %s5
  %s8 = scalar_select 0, %s7, %s5
  // Predicated region
  $region2: #{conv2d_basic_block.1} parent=0 // pred_check
    _
  $region3: #{conv2d_basic_block.1} parent=0 // pred_check_branch
    %10 = sbr.rel (0) target = $region5
  $region4: #{conv2d_basic_block.1} parent=0 // pred_region
    _
  $region5: #{conv2d_basic_block.1} parent=0 // pred_fallthru
    _
  // Predicated region
  $region6: #{conv2d_basic_block.1} parent=0 // pred_check
    _
  $region7: #{conv2d_basic_block.1} parent=0 // pred_check_branch
    %12 = sbr.rel (0) target = $region9
  $region8: #{conv2d_basic_block.1} parent=0 // pred_region
    _
  $region9: #{conv2d_basic_block.1} parent=0 // pred_fallthru
    _
  // Predicated region
  $region10: #{conv2d_basic_block.1} parent=0 // pred_check
    _
  $region11: #{conv2d_basic_block.1} parent=0 // pred_check_branch
    %14 = sbr.rel (0) target = $region13
  $region12: #{conv2d_basic_block.1} parent=0 // pred_region
    _
  $region13: #{conv2d_basic_block.1} parent=0 // pred_fallthru
    _
  // Predicated region
  $region14: #{conv2d_basic_block.1} parent=0 // pred_check
    _
  $region15: #{conv2d_basic_block.1} parent=0 // pred_check_branch
    %16 = sbr.rel (0) target = $region17
  $region16: #{conv2d_basic_block.1} parent=0 // pred_region
    _
  $region17: #{conv2d_basic_block.1} parent=0 // pred_fallthru
    _
  %v18 = vld [vmem:[%s1] sm:$0xf]
  %v19 = vld [vmem:[%s1 + $0x4] sm:$0xf]
  %v20 = vld [vmem:[%s0] sm:$0xff]
  %v21 = vld [vmem:[%s0 + $0x8] sm:$0xff]
  %v22 = vld [vmem:[%s0 + $0x10] sm:$0xff]
  %v23 = vld [vmem:[%s0 + $0x18] sm:$0xff]
  %v24 = vld [vmem:[%s0 + $0x20] sm:$0xff]
  %v25 = vld [vmem:[%s0 + $0x28] sm:$0xff]
  %v26 = vld [vmem:[%s0 + $0x30] sm:$0xff]
  %v27 = vld [vmem:[%s0 + $0x38] sm:$0xff]
  %v28 = vld [vmem:[%s0 + $0x40] sm:$0xff]
  %v31 = vunpack.c.l.b16 %v18
  %v32 = vunpack.c.l.b16 %v19
  %v33 = vpack.c.b16 %v32, %v31
  %v43 = vunpack.c.l.b16 %v20
  %v44 = vunpack.c.h.b16 %v20
  %v45 = vunpack.c.l.b16 %v21
  %v46 = vunpack.c.h.b16 %v21
  %v47 = vunpack.c.l.b16 %v22
  %v48 = vunpack.c.h.b16 %v22
  %v49 = vunpack.c.l.b16 %v23
  %v50 = vunpack.c.h.b16 %v23
  %v51 = vunpack.c.l.b16 %v24
  %v52 = vunpack.c.h.b16 %v24
  %v53 = vunpack.c.l.b16 %v25
  %v54 = vunpack.c.h.b16 %v25
  %v55 = vunpack.c.l.b16 %v26
  %v56 = vunpack.c.h.b16 %v26
  %v57 = vunpack.c.l.b16 %v27
  %v58 = vunpack.c.h.b16 %v27
  %v59 = vunpack.c.l.b16 %v28
  %v60 = vunpack.c.h.b16 %v28
  %v61 = vpack.c.b16 %v45, %v43
  %v62 = vpack.c.b16 %v46, %v44
  %v63 = vpack.c.b16 %v49, %v47
  %v64 = vpack.c.b16 %v50, %v48
  %v65 = vpack.c.b16 %v53, %v51
  %v66 = vpack.c.b16 %v54, %v52
  %v67 = vpack.c.b16 %v57, %v55
  %v68 = vpack.c.b16 %v58, %v56
  %v69 = vpack.c.b16 %v59, %v59
  %v70 = vpack.c.b16 %v60, %v60
  %vm79 = vcmask 588800
  %v81 = vsel %vm79, %v33, 0
  %vm83 = vcmask 1043456
  %v85 = vsel %vm83, %v69, 0
  %v88 = vsel %vm83, %v70, 0
  %90 = vmatprep.subr.bf16.mxu0 %v62
  %91 = vmatpush1.bf16.msra.mxu0 %v61
  %92 = vmatprep.subr.bf16.mxu0 %v64
  %93 = vmatpush1.bf16.msra.mxu0 %v63
  %94 = vmatprep.subr.bf16.mxu0 %v66
  %95 = vmatpush1.bf16.msra.mxu0 %v65
  %96 = vmatprep.subr.bf16.mxu0 %v68
  %97 = vmatpush1.bf16.msra.mxu0 %v67
  %98 = vmatprep.subr.bf16.mxu0 %v88
  %99 = vmatpush1.bf16.msra.mxu0 %v85
  %100 = vmatprep.subr.bf16.mxu0 0
  %101 = vmatpush1.bf16.msra.mxu0 0
  %102 = vmatprep.subr.bf16.mxu0 0
  %103 = vmatpush1.bf16.msra.mxu0 0
  %104 = vmatprep.subr.bf16.mxu0 0
  %105 = vmatpush1.bf16.msra.mxu0 0
  %106 = vmatprep.subr.bf16.mxu0 0
  %107 = vmatpush1.bf16.msra.mxu0 0
  %108 = vmatprep.subr.bf16.mxu0 0
  %109 = vmatpush1.bf16.msra.mxu0 0
  %110 = vmatprep.subr.bf16.mxu0 0
  %111 = vmatpush1.bf16.msra.mxu0 0
  %112 = vmatprep.subr.bf16.mxu0 0
  %113 = vmatpush1.bf16.msra.mxu0 0
  %114 = vmatprep.subr.bf16.mxu0 0
  %115 = vmatpush1.bf16.msra.mxu0 0
  %116 = vmatprep.subr.bf16.mxu0 0
  %117 = vmatpush1.bf16.msra.mxu0 0
  %118 = vmatprep.subr.bf16.mxu0 0
  %119 = vmatpush1.bf16.msra.mxu0 0
  %120 = vmatprep.subr.bf16.mxu0 0
  %121 = vmatpush1.bf16.msra.mxu0 0
  %122 = vmatprep.mubr.bf16.mxu0 0
  %123 = vmatmul.mubr.bf16.gmra.mrb[0].mxu0 %v81
  %v124 = vpop.f32.mrb[0].mxu0
  %v125 = vadd.f32 0.0, %v124
  %v126 = vpop.f32.mrb[0].mxu0
  %v127 = vadd.f32 0.0, %v126
  %v128 = vpop.f32.mrb[0].mxu0
  %v129 = vadd.f32 0.0, %v128
  %v130 = vpop.f32.mrb[0].mxu0
  %v131 = vadd.f32 0.0, %v130
  %132 = vdwg.mxu0
  %133 = vst [vmem:[%s4] sm:$0xff] %v125
  %134 = vst [vmem:[%s4 + $0x8] sm:$0xff] %v127
  %135 = vst [vmem:[%s4 + $0x10] sm:$0xff] %v129
  %136 = vst [vmem:[%s4 + $0x18] sm:$0xff] %v131
  %v137 = vadd.f32 %v125, %v127
  %138 = vadd.xlane.f32.xlu0 %v137
  %v139 = vpop.xlane.xlu0 %138
  %v140 = vadd.f32 %v129, %v131
  %141 = vadd.xlane.f32.xlu0 %v140
  %v142 = vpop.xlane.xlu0 %141
  %v143 = vadd.f32 %v139, 0.0
  %v144 = vadd.f32 %v142, 0.0
  %s145 = scalar_lea.vmem %s0, 72
  %v146 = vld [vmem:[%s145] sm:$0xff]
  %v147 = vld [vmem:[%s145 + $0x8] sm:$0xff]
  %v148 = vld [vmem:[%s145 + $0x10] sm:$0xff]
  %v149 = vld [vmem:[%s145 + $0x18] sm:$0xff]
  %v150 = vld [vmem:[%s145 + $0x20] sm:$0xff]
  %v151 = vld [vmem:[%s145 + $0x28] sm:$0xff]
  %v152 = vld [vmem:[%s145 + $0x30] sm:$0xff]
  %v153 = vld [vmem:[%s145 + $0x38] sm:$0xff]
  %v154 = vld [vmem:[%s145 + $0x40] sm:$0xff]
  %v164 = vunpack.c.l.b16 %v146
  %v165 = vunpack.c.h.b16 %v146
  %v166 = vunpack.c.l.b16 %v147
  %v167 = vunpack.c.h.b16 %v147
  %v168 = vunpack.c.l.b16 %v148
  %v169 = vunpack.c.h.b16 %v148
  %v170 = vunpack.c.l.b16 %v149
  %v171 = vunpack.c.h.b16 %v149
  %v172 = vunpack.c.l.b16 %v150
  %v173 = vunpack.c.h.b16 %v150
  %v174 = vunpack.c.l.b16 %v151
  %v175 = vunpack.c.h.b16 %v151
  %v176 = vunpack.c.l.b16 %v152
  %v177 = vunpack.c.h.b16 %v152
  %v178 = vunpack.c.l.b16 %v153
  %v179 = vunpack.c.h.b16 %v153
  %v180 = vunpack.c.l.b16 %v154
  %v181 = vunpack.c.h.b16 %v154
  %v182 = vpack.c.b16 %v166, %v164
  %v183 = vpack.c.b16 %v167, %v165
  %v184 = vpack.c.b16 %v170, %v168
  %v185 = vpack.c.b16 %v171, %v169
  %v186 = vpack.c.b16 %v174, %v172
  %v187 = vpack.c.b16 %v175, %v173
  %v188 = vpack.c.b16 %v178, %v176
  %v189 = vpack.c.b16 %v179, %v177
  %v190 = vpack.c.b16 %v180, %v180
  %v191 = vpack.c.b16 %v181, %v181
  %v201 = vsel %vm83, %v190, 0
  %v204 = vsel %vm83, %v191, 0
  %206 = vmatprep.subr.bf16.mxu0 %v183
  %207 = vmatpush1.bf16.msra.mxu0 %v182
  %208 = vmatprep.subr.bf16.mxu0 %v185
  %209 = vmatpush1.bf16.msra.mxu0 %v184
  %210 = vmatprep.subr.bf16.mxu0 %v187
  %211 = vmatpush1.bf16.msra.mxu0 %v186
  %212 = vmatprep.subr.bf16.mxu0 %v189
  %213 = vmatpush1.bf16.msra.mxu0 %v188
  %214 = vmatprep.subr.bf16.mxu0 %v204
  %215 = vmatpush1.bf16.msra.mxu0 %v201
  %216 = vmatprep.subr.bf16.mxu0 0
  %217 = vmatpush1.bf16.msra.mxu0 0
  %218 = vmatprep.subr.bf16.mxu0 0
  %219 = vmatpush1.bf16.msra.mxu0 0
  %220 = vmatprep.subr.bf16.mxu0 0
  %221 = vmatpush1.bf16.msra.mxu0 0
  %222 = vmatprep.subr.bf16.mxu0 0
  %223 = vmatpush1.bf16.msra.mxu0 0
  %224 = vmatprep.subr.bf16.mxu0 0
  %225 = vmatpush1.bf16.msra.mxu0 0
  %226 = vmatprep.subr.bf16.mxu0 0
  %227 = vmatpush1.bf16.msra.mxu0 0
  %228 = vmatprep.subr.bf16.mxu0 0
  %229 = vmatpush1.bf16.msra.mxu0 0
  %230 = vmatprep.subr.bf16.mxu0 0
  %231 = vmatpush1.bf16.msra.mxu0 0
  %232 = vmatprep.subr.bf16.mxu0 0
  %233 = vmatpush1.bf16.msra.mxu0 0
  %234 = vmatprep.subr.bf16.mxu0 0
  %235 = vmatpush1.bf16.msra.mxu0 0
  %236 = vmatprep.subr.bf16.mxu0 0
  %237 = vmatpush1.bf16.msra.mxu0 0
  %238 = vmatprep.mubr.bf16.mxu0 0
  %239 = vmatmul.mubr.bf16.gmra.mrb[0].mxu0 %v81
  %v240 = vpop.f32.mrb[0].mxu0
  %v241 = vadd.f32 0.0, %v240
  %v242 = vpop.f32.mrb[0].mxu0
  %v243 = vadd.f32 0.0, %v242
  %v244 = vpop.f32.mrb[0].mxu0
  %v245 = vadd.f32 0.0, %v244
  %v246 = vpop.f32.mrb[0].mxu0
  %v247 = vadd.f32 0.0, %v246
  %248 = vdwg.mxu0
  %s249 = scalar_lea.vmem %s4, 32
  %250 = vst [vmem:[%s249] sm:$0xff] %v241
  %251 = vst [vmem:[%s249 + $0x8] sm:$0xff] %v243
  %252 = vst [vmem:[%s249 + $0x10] sm:$0xff] %v245
  %253 = vst [vmem:[%s249 + $0x18] sm:$0xff] %v247
  %v254 = vadd.f32 %v241, %v243
  %255 = vadd.xlane.f32.xlu0 %v254
  %v256 = vpop.xlane.xlu0 %255
  %v257 = vadd.f32 %v245, %v247
  %258 = vadd.xlane.f32.xlu0 %v257
  %v259 = vpop.xlane.xlu0 %258
  %v260 = vadd.f32 %v143, %v256
  %v261 = vadd.f32 %v144, %v259
  %v262 = vrcp.pop 512.0
  %v263 = vmul.f32 %v260, %v262
  %v264 = vmul.f32 %v261, %v262
  %v265 = vld [vmem:[%s4] sm:$0xff]
  %v266 = vld [vmem:[%s4 + $0x8] sm:$0xff]
  %v267 = vld [vmem:[%s4 + $0x10] sm:$0xff]
  %v268 = vld [vmem:[%s4 + $0x18] sm:$0xff]
  %v269 = vsub.f32 %v265, %v263
  %v270 = vsub.f32 %v266, %v263
  %v271 = vsub.f32 %v267, %v264
  %v272 = vsub.f32 %v268, %v264
  %v273 = vmul.f32 %v269, %v269
  %v274 = vmul.f32 %v270, %v270
  %v275 = vmul.f32 %v271, %v271
  %v276 = vmul.f32 %v272, %v272
  %v277 = vadd.f32 %v273, %v274
  %278 = vadd.xlane.f32.xlu0 %v277
  %v279 = vpop.xlane.xlu0 %278
  %v280 = vadd.f32 %v275, %v276
  %281 = vadd.xlane.f32.xlu0 %v280
  %v282 = vpop.xlane.xlu0 %281
  %v283 = vadd.f32 %v279, 0.0
  %v284 = vadd.f32 %v282, 0.0
  %v285 = vld [vmem:[%s249] sm:$0xff]
  %v286 = vld [vmem:[%s249 + $0x8] sm:$0xff]
  %v287 = vld [vmem:[%s249 + $0x10] sm:$0xff]
  %v288 = vld [vmem:[%s249 + $0x18] sm:$0xff]
  %v289 = vsub.f32 %v285, %v263
  %v290 = vsub.f32 %v286, %v263
  %v291 = vsub.f32 %v287, %v264
  %v292 = vsub.f32 %v288, %v264
  %v293 = vmul.f32 %v289, %v289
  %v294 = vmul.f32 %v290, %v290
  %v295 = vmul.f32 %v291, %v291
  %v296 = vmul.f32 %v292, %v292
  %v297 = vadd.f32 %v293, %v294
  %298 = vadd.xlane.f32.xlu0 %v297
  %v299 = vpop.xlane.xlu0 %298
  %v300 = vadd.f32 %v295, %v296
  %301 = vadd.xlane.f32.xlu0 %v300
  %v302 = vpop.xlane.xlu0 %301
  %v303 = vadd.f32 %v283, %v299
  %v304 = vadd.f32 %v284, %v302
  %v305 = vmul.f32 %v303, %v262
  %v306 = vmul.f32 %v304, %v262
  %v307 = vadd.f32 %v305, 1e-05
  %v308 = vadd.f32 %v306, 1e-05
  %v309 = vrsqrt.pop %v307
  %v310 = vrsqrt.pop %v308
  %v311 = vld [vmem:[%s2] sm:$0xff]
  %v312 = vld [vmem:[%s2 + $0x8] sm:$0xff]
  %v313 = vmul.f32 %v311, %v309
  %v314 = vmul.f32 %v312, %v310
  %v315 = vld [vmem:[%s3] sm:$0xff]
  %v316 = vld [vmem:[%s3 + $0x8] sm:$0xff]
  %v317 = vmul.f32 %v263, %v313
  %v318 = vmul.f32 %v264, %v314
  %v319 = vsub.f32 %v315, %v317
  %v320 = vsub.f32 %v316, %v318
  %322 = vset.pattern.permute.xlu0 0
  %323 = vperm.xlu0 %322, %v313
  %v324 = vpop.permute.xlu0 %323
  %327 = vset.pattern.permute.xlu0 0
  %328 = vperm.xlu0 %327, %v314
  %v329 = vpop.permute.xlu0 %328
  %v331 = vmul.f32 %v265, %v324
  %v332 = vmul.f32 %v266, %v324
  %v333 = vmul.f32 %v267, %v329
  %v334 = vmul.f32 %v268, %v329
  %336 = vset.pattern.permute.xlu0 0
  %337 = vperm.xlu0 %336, %v319
  %v338 = vpop.permute.xlu0 %337
  %341 = vset.pattern.permute.xlu0 0
  %342 = vperm.xlu0 %341, %v320
  %v343 = vpop.permute.xlu0 %342
  %v345 = vadd.f32 %v331, %v338
  %v346 = vadd.f32 %v332, %v338
  %v347 = vadd.f32 %v333, %v343
  %v348 = vadd.f32 %v334, %v343
  %v349 = vmax.f32 %v345, 0.0
  %v350 = vmax.f32 %v346, 0.0
  %v351 = vmax.f32 %v347, 0.0
  %v352 = vmax.f32 %v348, 0.0
  %353 = vst [vmem:[%s4] sm:$0xff] %v349
  %354 = vst [vmem:[%s4 + $0x8] sm:$0xff] %v350
  %355 = vst [vmem:[%s4 + $0x10] sm:$0xff] %v351
  %356 = vst [vmem:[%s4 + $0x18] sm:$0xff] %v352
  %v357 = vld [vmem:[%s249] sm:$0xff]
  %v358 = vld [vmem:[%s249 + $0x8] sm:$0xff]
  %v359 = vld [vmem:[%s249 + $0x10] sm:$0xff]
  %v360 = vld [vmem:[%s249 + $0x18] sm:$0xff]
  %v361 = vmul.f32 %v357, %v324
  %v362 = vmul.f32 %v358, %v324
  %v363 = vmul.f32 %v359, %v329
  %v364 = vmul.f32 %v360, %v329
  %v365 = vadd.f32 %v361, %v338
  %v366 = vadd.f32 %v362, %v338
  %v367 = vadd.f32 %v363, %v343
  %v368 = vadd.f32 %v364, %v343
  %v369 = vmax.f32 %v365, 0.0
  %v370 = vmax.f32 %v366, 0.0
  %v371 = vmax.f32 %v367, 0.0
  %v372 = vmax.f32 %v368, 0.0
  %373 = vst [vmem:[%s249] sm:$0xff] %v369
  %374 = vst [vmem:[%s249 + $0x8] sm:$0xff] %v370
  %375 = vst [vmem:[%s249 + $0x10] sm:$0xff] %v371
  %376 = vst [vmem:[%s249 + $0x18] sm:$0xff] %v372
  // Predicated region
  $region18: #{conv2d_basic_block.1} parent=0 // pred_check
    _
  $region19: #{conv2d_basic_block.1} parent=0 // pred_check_branch
    %378 = sbr.rel (0) target = $region21
  $region20: #{conv2d_basic_block.1} parent=0 // pred_region
    _
  $region21: #{conv2d_basic_block.1} parent=0 // pred_fallthru
    _
  // Predicated region
  $region22: #{conv2d_basic_block.1} parent=0 // pred_check
    _
  $region23: #{conv2d_basic_block.1} parent=0 // pred_check_branch
    %380 = sbr.rel (0) target = $region25
  $region24: #{conv2d_basic_block.1} parent=0 // pred_region
    _
  $region25: #{conv2d_basic_block.1} parent=0 // pred_fallthru
    _

</llo_original>
